<compile_context>
chip_gen: v7x
topology: tpu7x:2x2x1
jax: 0.10.0
libtpu: 0.0.40
codegen_flags: <defaults>
</compile_context>

<pallas_src>
import jax
import jax.numpy as jnp
from jax.experimental import pallas as pl
from jax.experimental.pallas import tpu as pltpu

B = 2          # batch
C_IN = 4       # input channels
HW = 16        # spatial (H == W)
F_FEAT = 32    # small stand-in for densenet121's 1024-d feature vector
NUM_EXTRA = 4  # num_extra
N_OUT = 2      # n_outputs
KH = KW = 3

P = HW * HW               # spatial positions per image
M = B * P                 # flattened matmul M dim (512)
K_RAW = KH * KW * C_IN    # 36
LANE = 128
K_PAD = LANE              # contraction dim padded lane-dense
F_PAD = LANE              # feature dim padded lane-dense
E_PAD = LANE              # extra dim padded lane-dense
N_PAD = LANE              # head output padded lane-dense


def _vmem():
    return pl.BlockSpec(memory_space=pltpu.MemorySpace.VMEM)


def _pad2(a, rows, cols):
    r, c = a.shape
    return jnp.pad(a, ((0, rows - r), (0, cols - c)))


# ----------------------------------------------------------------------------
# Single fused kernel: conv-as-matmul + bias + ReLU + avg-pool-as-matmul +
# concat-split classifier head.
# ----------------------------------------------------------------------------
def fused_kernel(patches_ref, conv_w_ref, conv_b_ref, pool_ref,
                 extra_ref, wf_ref, we_ref, cls_b_ref, out_ref):
    # conv: one 2-D MXU matmul, bf16 operands, f32 accumulation
    h = jnp.dot(patches_ref[...], conv_w_ref[...],
                preferred_element_type=jnp.float32)          # (M, F_PAD) f32
    h = jnp.maximum(h + conv_b_ref[...], 0.0)                # bias + ReLU (f32)

    # global average pool as block-diagonal matmul: (B, M) @ (M, F_PAD)
    feat = jnp.dot(pool_ref[...], h,
                   preferred_element_type=jnp.float32)       # (B, F_PAD)

    # head: cat((feat, extra), -1) @ W + b  ==  feat @ Wf + extra @ We + b
    out = jnp.dot(feat, wf_ref[...], preferred_element_type=jnp.float32)
    out = out + jnp.dot(extra_ref[...], we_ref[...],
                        preferred_element_type=jnp.float32)
    out_ref[...] = out + cls_b_ref[...]                      # (B, N_PAD)


# ------------------------------- JAX glue -----------------------------------
def im2col(x_nchw):
    # NCHW -> NHWC, pad 1, extract 3x3 stride-1 patches -> (B, H*W, KH*KW*C)
    x = jnp.transpose(x_nchw, (0, 2, 3, 1))                       # (B,H,W,C)
    xp = jnp.pad(x, ((0, 0), (1, 1), (1, 1), (0, 0)))
    pats = [xp[:, i:i + HW, j:j + HW, :] for i in range(KH) for j in range(KW)]
    p = jnp.stack(pats, axis=3)                                   # (B,H,W,9,C)
    return p.reshape(B, P, K_RAW)


def conv_conf_emb_forward(x_nchw, extra, params):
    # flatten batch*spatial into one big M, pad lane dims, cast MXU ops to bf16
    patches = im2col(x_nchw).reshape(M, K_RAW)
    patches_p = _pad2(patches, M, K_PAD).astype(jnp.bfloat16)
    conv_w_p = _pad2(params["conv_w"], K_PAD, F_PAD).astype(jnp.bfloat16)
    conv_b_p = _pad2(params["conv_b"], 1, F_PAD)

    # block-diagonal (1/P) pooling matrix: row b averages rows b*P .. b*P+P-1
    pool = jnp.kron(jnp.eye(B, dtype=jnp.float32),
                    jnp.full((1, P), 1.0 / P, jnp.float32))        # (B, M)

    extra_p = _pad2(extra, B, E_PAD)
    wf_p = _pad2(params["wf"], F_PAD, N_PAD)
    we_p = _pad2(params["we"], E_PAD, N_PAD)
    cls_b_p = _pad2(params["cls_b"], 1, N_PAD)

    out_pad = pl.pallas_call(
        fused_kernel,
        out_shape=jax.ShapeDtypeStruct((B, N_PAD), jnp.float32),
        in_specs=[_vmem()] * 8,
        out_specs=_vmem(),
    )(patches_p, conv_w_p, conv_b_p, pool, extra_p, wf_p, we_p, cls_b_p)

    return out_pad[:, :N_OUT]


def reference_forward(x_nchw, extra, params):
    # pure-f32 reference of the module semantics
    hp = jax.lax.Precision.HIGHEST
    patches = im2col(x_nchw)
    h = jnp.einsum("bpk,kf->bpf", patches, params["conv_w"],
                   precision=hp) + params["conv_b"]
    feat = jnp.mean(jnp.maximum(h, 0.0), axis=1)
    cat = jnp.concatenate([feat, extra], axis=-1)           # torch.cat(..., -1)
    w_full = jnp.concatenate([params["wf"], params["we"]], axis=0)
    return jnp.dot(cat, w_full, precision=hp) + params["cls_b"]


if __name__ == "__main__":
    key = jax.random.PRNGKey(0)
    kx, ke, k1, k2, k3, k4, k5 = jax.random.split(key, 7)

    # NCHW input, matching the PyTorch convention.
    x = jax.random.normal(kx, (B, C_IN, HW, HW), dtype=jnp.float32)
    extra = jax.random.normal(ke, (B, NUM_EXTRA), dtype=jnp.float32)

    params = {
        # conv weight stored as (KH*KW*C_IN, F_FEAT) to match im2col ordering
        "conv_w": 0.1 * jax.random.normal(k1, (K_RAW, F_FEAT), jnp.float32),
        "conv_b": 0.1 * jax.random.normal(k2, (1, F_FEAT), jnp.float32),
        # nn.Linear(num_ftrs, n_outputs) split into feature / extra halves
        "wf": 0.1 * jax.random.normal(k3, (F_FEAT, N_OUT), jnp.float32),
        "we": 0.1 * jax.random.normal(k4, (NUM_EXTRA, N_OUT), jnp.float32),
        "cls_b": 0.1 * jax.random.normal(k5, (1, N_OUT), jnp.float32),
    }

    out = conv_conf_emb_forward(x, extra, params)
    out = jax.block_until_ready(out)

    ref = reference_forward(x, extra, params)
    assert out.shape == (B, N_OUT)
    # tolerance accounts for the bf16 cast of the conv MXU operands
    assert jnp.allclose(out, ref, atol=2e-2, rtol=2e-2), (out, ref)
    print("KERNEL_OK")
</pallas_src>

<mosaic_0001>
module attributes {stable_mosaic.version = 11 : i64} {
  func.func @fused_kernel(%arg0: memref<512x128xbf16, #tpu.memory_space<vmem>>, %arg1: memref<128x128xbf16, #tpu.memory_space<vmem>>, %arg2: memref<1x128xf32, #tpu.memory_space<vmem>>, %arg3: memref<2x512xf32, #tpu.memory_space<vmem>>, %arg4: memref<2x128xf32, #tpu.memory_space<vmem>>, %arg5: memref<128x128xf32, #tpu.memory_space<vmem>>, %arg6: memref<128x128xf32, #tpu.memory_space<vmem>>, %arg7: memref<1x128xf32, #tpu.memory_space<vmem>>, %arg8: memref<2x128xf32, #tpu.memory_space<vmem>>) attributes {dimension_semantics = [], scalar_prefetch = 0 : i64, scratch_operands = 0 : i64, tpu.core_type = #tpu.core_type<tc>} {
    %c0 = arith.constant 0 : index
    %c0_0 = arith.constant 0 : index
    %0 = vector.load %arg0[%c0, %c0_0] : memref<512x128xbf16, #tpu.memory_space<vmem>>, vector<512x128xbf16>
    %c0_1 = arith.constant 0 : index
    %c0_2 = arith.constant 0 : index
    %1 = vector.load %arg1[%c0_1, %c0_2] : memref<128x128xbf16, #tpu.memory_space<vmem>>, vector<128x128xbf16>
    %cst = arith.constant dense<0.000000e+00> : vector<512x128xf32>
    %2 = tpu.matmul %0, %1, %cst {dimension_numbers = #tpu.dot_dimension_numbers<[1], [0], [0], [1], [0, 0, 1, 1], [], []>} : vector<512x128xbf16>, vector<128x128xbf16>, vector<512x128xf32> -> vector<512x128xf32>
    %c0_3 = arith.constant 0 : index
    %c0_4 = arith.constant 0 : index
    %3 = vector.load %arg2[%c0_3, %c0_4] : memref<1x128xf32, #tpu.memory_space<vmem>>, vector<1x128xf32>
    %4 = vector.broadcast %3 : vector<1x128xf32> to vector<512x128xf32>
    %5 = arith.addf %2, %4 : vector<512x128xf32>
    %cst_5 = arith.constant 0.000000e+00 : f32
    %6 = vector.broadcast %cst_5 : f32 to vector<512x128xf32>
    %7 = arith.maximumf %5, %6 : vector<512x128xf32>
    %c0_6 = arith.constant 0 : index
    %c0_7 = arith.constant 0 : index
    %8 = vector.load %arg3[%c0_6, %c0_7] : memref<2x512xf32, #tpu.memory_space<vmem>>, vector<2x512xf32>
    %cst_8 = arith.constant dense<0.000000e+00> : vector<2x128xf32>
    %9 = tpu.matmul %8, %7, %cst_8 {dimension_numbers = #tpu.dot_dimension_numbers<[1], [0], [0], [1], [0, 0, 1, 1], [], []>} : vector<2x512xf32>, vector<512x128xf32>, vector<2x128xf32> -> vector<2x128xf32>
    %c0_9 = arith.constant 0 : index
    %c0_10 = arith.constant 0 : index
    %10 = vector.load %arg5[%c0_9, %c0_10] : memref<128x128xf32, #tpu.memory_space<vmem>>, vector<128x128xf32>
    %cst_11 = arith.constant dense<0.000000e+00> : vector<2x128xf32>
    %11 = tpu.matmul %9, %10, %cst_11 {dimension_numbers = #tpu.dot_dimension_numbers<[1], [0], [0], [1], [0, 0, 1, 1], [], []>} : vector<2x128xf32>, vector<128x128xf32>, vector<2x128xf32> -> vector<2x128xf32>
    %c0_12 = arith.constant 0 : index
    %c0_13 = arith.constant 0 : index
    %12 = vector.load %arg4[%c0_12, %c0_13] : memref<2x128xf32, #tpu.memory_space<vmem>>, vector<2x128xf32>
    %c0_14 = arith.constant 0 : index
    %c0_15 = arith.constant 0 : index
    %13 = vector.load %arg6[%c0_14, %c0_15] : memref<128x128xf32, #tpu.memory_space<vmem>>, vector<128x128xf32>
    %cst_16 = arith.constant dense<0.000000e+00> : vector<2x128xf32>
    %14 = tpu.matmul %12, %13, %cst_16 {dimension_numbers = #tpu.dot_dimension_numbers<[1], [0], [0], [1], [0, 0, 1, 1], [], []>} : vector<2x128xf32>, vector<128x128xf32>, vector<2x128xf32> -> vector<2x128xf32>
    %15 = arith.addf %11, %14 : vector<2x128xf32>
    %c0_17 = arith.constant 0 : index
    %c0_18 = arith.constant 0 : index
    %16 = vector.load %arg7[%c0_17, %c0_18] : memref<1x128xf32, #tpu.memory_space<vmem>>, vector<1x128xf32>
    %17 = vector.broadcast %16 : vector<1x128xf32> to vector<2x128xf32>
    %18 = arith.addf %15, %17 : vector<2x128xf32>
    %c0_19 = arith.constant 0 : index
    %c0_20 = arith.constant 0 : index
    %19 = vector.load %arg8[%c0_19, %c0_20] : memref<2x128xf32, #tpu.memory_space<vmem>>, vector<2x128xf32>
    tpu.vector_store %arg8[%c0_19, %c0_20], %18 {strides = array<i32>} : memref<2x128xf32, #tpu.memory_space<vmem>>, vector<2x128xf32>,
    return
  }
}

</mosaic_0001>

<llo_original>
// kernel: tpu_custom_call.1
$region0: #{tpu_custom_call.1}
  #allocation0 [shape = 'u32[]', space=smem, size = 0x4, offset = 0x4, fixed_abs, tag = 'smem constant byte address 0x4 - core index']
  #allocation1 [shape = 'u32[144,128]{1,0:T(1,128)}', space=vmem, size = 0x12000, scoped, tag = 'internal scratch']
  %s0 = inlined_call_operand.hbm [shape: bf16[512,128], index: 0, kind: input, shape index: {}]
  %s1 = inlined_call_operand.hbm [shape: bf16[128,128], index: 1, kind: input, shape index: {}]
  %s2 = inlined_call_operand.vmem [shape: f32[1,128], index: 2, kind: input, shape index: {}]
  %s3 = inlined_call_operand.vmem [shape: f32[2,512], index: 3, kind: input, shape index: {}]
  %s4 = inlined_call_operand.vmem [shape: f32[2,128], index: 4, kind: input, shape index: {}]
  %s5 = inlined_call_operand.hbm [shape: f32[128,128], index: 5, kind: input, shape index: {}]
  %s6 = inlined_call_operand.hbm [shape: f32[128,128], index: 6, kind: input, shape index: {}]
  %s7 = inlined_call_operand.vmem [shape: f32[1,128], index: 7, kind: input, shape index: {}]
  %s8 = inlined_call_operand.hbm [shape: f32[2,128], index: 8, kind: output, shape index: {}]
  %s9 = sld [smem:[#allocation0]]
  $region58: #{tpu_custom_call.1} parent=0
    _
  %s11 = ssub.s32 1, %s9
  %s12 = scalar_select 0, %s11, %s9
  $region1: #{tpu_custom_call.1} parent=0
    #allocation2 [shape = 'u8[131072]{0}', space=vmem, size = 0x20000, scoped, tag = 'input window, operand 0, single buffered']
    #allocation3 [shape = 's32[1]{0}', space=sflag, size = 0x4, scoped, tag = 'scoped memory for tpu_custom_call.1']
    #allocation4 [shape = 's32[1]{0}', space=sflag, size = 0x4, scoped, tag = 'scoped memory for tpu_custom_call.1']
    #allocation5 [shape = 'u8[32768]{0}', space=vmem, size = 0x8000, scoped, tag = 'input window, operand 1, single buffered']
    #allocation6 [shape = 's32[1]{0}', space=sflag, size = 0x4, scoped, tag = 'scoped memory for tpu_custom_call.1']
    #allocation7 [shape = 'u8[65536]{0}', space=vmem, size = 0x10000, scoped, tag = 'input window, operand 5, single buffered']
    #allocation8 [shape = 'u8[65536]{0}', space=vmem, size = 0x10000, scoped, tag = 'input window, operand 6, single buffered']
    #allocation9 [shape = 's32[1]{0}', space=sflag, size = 0x4, scoped, tag = 'scoped memory for tpu_custom_call.1']
    #allocation10 [shape = 'u8[1024]{0}', space=vmem, size = 0x400, scoped, tag = 'output window, operand 0, single buffered']
    %13 = vsyncpa [#allocation3], 0
    %14 = vsyncpa [#allocation6], 0
    %15 = vsyncpa [#allocation9], 0
    %16 = vsyncpa [#allocation4], 0
    // Predicated region
    $region2: #{tpu_custom_call.1} parent=1 // pred_check
      _
    $region3: #{tpu_custom_call.1} parent=1 // pred_check_branch
      %18 = sbr.rel (0) target = $region5
    $region4: #{tpu_custom_call.1} parent=1 // pred_region
      %s20 = ssub.s32 4096, 4096
      %21 = vsyncadd [#allocation3], %s20
      %s22 = sshll.u32 [#allocation2], 4
      %s23 = int_to_ptr.vmem [resolvable:$true] %s22
      %28 = dma.hbm_to_vmem [thread:$0]  %s0, 4096, %s23, [#allocation3], 64, 64, 4
    $region5: #{tpu_custom_call.1} parent=1 // pred_fallthru
      _
    // Predicated region
    $region6: #{tpu_custom_call.1} parent=1 // pred_check
      _
    $region7: #{tpu_custom_call.1} parent=1 // pred_check_branch
      %30 = sbr.rel (0) target = $region9
    $region8: #{tpu_custom_call.1} parent=1 // pred_region
      %s32 = ssub.s32 1024, 1024
      %33 = vsyncadd [#allocation6], %s32
      %s34 = sshll.u32 [#allocation5], 4
      %s35 = int_to_ptr.vmem [resolvable:$true] %s34
      %40 = dma.hbm_to_vmem [thread:$0]  %s1, 1024, %s35, [#allocation6], 64, 64, 4
    $region9: #{tpu_custom_call.1} parent=1 // pred_fallthru
      _
    // Predicated region
    $region10: #{tpu_custom_call.1} parent=1 // pred_check
      _
    $region11: #{tpu_custom_call.1} parent=1 // pred_check_branch
      %42 = sbr.rel (0) target = $region13
    $region12: #{tpu_custom_call.1} parent=1 // pred_region
      _
    $region13: #{tpu_custom_call.1} parent=1 // pred_fallthru
      _
    // Predicated region
    $region14: #{tpu_custom_call.1} parent=1 // pred_check
      _
    $region15: #{tpu_custom_call.1} parent=1 // pred_check_branch
      %44 = sbr.rel (0) target = $region17
    $region16: #{tpu_custom_call.1} parent=1 // pred_region
      _
    $region17: #{tpu_custom_call.1} parent=1 // pred_fallthru
      _
    // Predicated region
    $region18: #{tpu_custom_call.1} parent=1 // pred_check
      _
    $region19: #{tpu_custom_call.1} parent=1 // pred_check_branch
      %46 = sbr.rel (0) target = $region21
    $region20: #{tpu_custom_call.1} parent=1 // pred_region
      _
    $region21: #{tpu_custom_call.1} parent=1 // pred_fallthru
      _
    // Predicated region
    $region22: #{tpu_custom_call.1} parent=1 // pred_check
      _
    $region23: #{tpu_custom_call.1} parent=1 // pred_check_branch
      %48 = sbr.rel (0) target = $region25
    $region24: #{tpu_custom_call.1} parent=1 // pred_region
      %s50 = ssub.s32 2048, 2048
      %51 = vsyncadd [#allocation6], %s50
      %s52 = sshll.u32 [#allocation7], 4
      %s53 = int_to_ptr.vmem [resolvable:$true] %s52
      %58 = dma.hbm_to_vmem [thread:$0]  %s5, 2048, %s53, [#allocation6], 128, 128, 8
    $region25: #{tpu_custom_call.1} parent=1 // pred_fallthru
      _
    // Predicated region
    $region26: #{tpu_custom_call.1} parent=1 // pred_check
      _
    $region27: #{tpu_custom_call.1} parent=1 // pred_check_branch
      %60 = sbr.rel (0) target = $region29
    $region28: #{tpu_custom_call.1} parent=1 // pred_region
      %s62 = ssub.s32 2048, 2048
      %63 = vsyncadd [#allocation9], %s62
      %s64 = sshll.u32 [#allocation8], 4
      %s65 = int_to_ptr.vmem [resolvable:$true] %s64
      %70 = dma.hbm_to_vmem [thread:$0]  %s6, 2048, %s65, [#allocation9], 128, 128, 8
    $region29: #{tpu_custom_call.1} parent=1 // pred_fallthru
      _
    // Predicated region
    $region30: #{tpu_custom_call.1} parent=1 // pred_check
      _
    $region31: #{tpu_custom_call.1} parent=1 // pred_check_branch
      %72 = sbr.rel (0) target = $region33
    $region32: #{tpu_custom_call.1} parent=1 // pred_region
      _
    $region33: #{tpu_custom_call.1} parent=1 // pred_fallthru
      _
    // Predicated region
    $region34: #{tpu_custom_call.1} parent=1 // pred_check
      _
    $region35: #{tpu_custom_call.1} parent=1 // pred_check_branch
      %74 = sbr.rel (0) target = $region37
    $region36: #{tpu_custom_call.1} parent=1 // pred_region
      %75 = dma.done [#allocation3], 4096
    $region37: #{tpu_custom_call.1} parent=1 // pred_fallthru
      _
    // Predicated region
    $region38: #{tpu_custom_call.1} parent=1 // pred_check
      _
    $region39: #{tpu_custom_call.1} parent=1 // pred_check_branch
      %77 = sbr.rel (0) target = $region41
    $region40: #{tpu_custom_call.1} parent=1 // pred_region
      %78 = dma.done [#allocation6], 1024
    $region41: #{tpu_custom_call.1} parent=1 // pred_fallthru
      _
    // Predicated region
    $region42: #{tpu_custom_call.1} parent=1 // pred_check
      _
    $region43: #{tpu_custom_call.1} parent=1 // pred_check_branch
      %80 = sbr.rel (0) target = $region45
    $region44: #{tpu_custom_call.1} parent=1 // pred_region
      %81 = dma.done [#allocation6], 2048
    $region45: #{tpu_custom_call.1} parent=1 // pred_fallthru
      _
    // Predicated region
    $region46: #{tpu_custom_call.1} parent=1 // pred_check
      _
    $region47: #{tpu_custom_call.1} parent=1 // pred_check_branch
      %83 = sbr.rel (0) target = $region49
    $region48: #{tpu_custom_call.1} parent=1 // pred_region
      %84 = dma.done [#allocation9], 2048
    $region49: #{tpu_custom_call.1} parent=1 // pred_fallthru
      _
    %v86 = vld [vmem:[#allocation2] sm:$0xf]
    %v87 = vld [vmem:[#allocation2 + $0x4] sm:$0xf]
    %v88 = vld [vmem:[#allocation2 + $0x8] sm:$0xf]
    %v89 = vld [vmem:[#allocation2 + $0xc] sm:$0xf]
    %v90 = vld [vmem:[#allocation2 + $0x10] sm:$0xf]
    %v91 = vld [vmem:[#allocation2 + $0x14] sm:$0xf]
    %v92 = vld [vmem:[#allocation2 + $0x18] sm:$0xf]
    %v93 = vld [vmem:[#allocation2 + $0x1c] sm:$0xf]
    %v94 = vld [vmem:[#allocation2 + $0x20] sm:$0xf]
    %v95 = vld [vmem:[#allocation2 + $0x24] sm:$0xf]
    %v96 = vld [vmem:[#allocation2 + $0x28] sm:$0xf]
    %v97 = vld [vmem:[#allocation2 + $0x2c] sm:$0xf]
    %v98 = vld [vmem:[#allocation2 + $0x30] sm:$0xf]
    %v99 = vld [vmem:[#allocation2 + $0x34] sm:$0xf]
    %v100 = vld [vmem:[#allocation2 + $0x38] sm:$0xf]
    %v101 = vld [vmem:[#allocation2 + $0x3c] sm:$0xf]
    %v102 = vld [vmem:[#allocation2 + $0x40] sm:$0xf]
    %v103 = vld [vmem:[#allocation2 + $0x44] sm:$0xf]
    %v104 = vld [vmem:[#allocation2 + $0x48] sm:$0xf]
    %v105 = vld [vmem:[#allocation2 + $0x4c] sm:$0xf]
    %v106 = vld [vmem:[#allocation2 + $0x50] sm:$0xf]
    %v107 = vld [vmem:[#allocation2 + $0x54] sm:$0xf]
    %v108 = vld [vmem:[#allocation2 + $0x58] sm:$0xf]
    %v109 = vld [vmem:[#allocation2 + $0x5c] sm:$0xf]
    %v110 = vld [vmem:[#allocation2 + $0x60] sm:$0xf]
    %v111 = vld [vmem:[#allocation2 + $0x64] sm:$0xf]
    %v112 = vld [vmem:[#allocation2 + $0x68] sm:$0xf]
    %v113 = vld [vmem:[#allocation2 + $0x6c] sm:$0xf]
    %v114 = vld [vmem:[#allocation2 + $0x70] sm:$0xf]
    %v115 = vld [vmem:[#allocation2 + $0x74] sm:$0xf]
    %v116 = vld [vmem:[#allocation2 + $0x78] sm:$0xf]
    %v117 = vld [vmem:[#allocation2 + $0x7c] sm:$0xf]
    %v118 = vld [vmem:[#allocation2 + $0x80] sm:$0xf]
    %v119 = vld [vmem:[#allocation2 + $0x84] sm:$0xf]
    %v120 = vld [vmem:[#allocation2 + $0x88] sm:$0xf]
    %v121 = vld [vmem:[#allocation2 + $0x8c] sm:$0xf]
    %v122 = vld [vmem:[#allocation2 + $0x90] sm:$0xf]
    %v123 = vld [vmem:[#allocation2 + $0x94] sm:$0xf]
    %v124 = vld [vmem:[#allocation2 + $0x98] sm:$0xf]
    %v125 = vld [vmem:[#allocation2 + $0x9c] sm:$0xf]
    %v126 = vld [vmem:[#allocation2 + $0xa0] sm:$0xf]
    %v127 = vld [vmem:[#allocation2 + $0xa4] sm:$0xf]
    %v128 = vld [vmem:[#allocation2 + $0xa8] sm:$0xf]
    %v129 = vld [vmem:[#allocation2 + $0xac] sm:$0xf]
    %v130 = vld [vmem:[#allocation2 + $0xb0] sm:$0xf]
    %v131 = vld [vmem:[#allocation2 + $0xb4] sm:$0xf]
    %v132 = vld [vmem:[#allocation2 + $0xb8] sm:$0xf]
    %v133 = vld [vmem:[#allocation2 + $0xbc] sm:$0xf]
    %v134 = vld [vmem:[#allocation2 + $0xc0] sm:$0xf]
    %v135 = vld [vmem:[#allocation2 + $0xc4] sm:$0xf]
    %v136 = vld [vmem:[#allocation2 + $0xc8] sm:$0xf]
    %v137 = vld [vmem:[#allocation2 + $0xcc] sm:$0xf]
    %v138 = vld [vmem:[#allocation2 + $0xd0] sm:$0xf]
    %v139 = vld [vmem:[#allocation2 + $0xd4] sm:$0xf]
    %v140 = vld [vmem:[#allocation2 + $0xd8] sm:$0xf]
    %v141 = vld [vmem:[#allocation2 + $0xdc] sm:$0xf]
    %v142 = vld [vmem:[#allocation2 + $0xe0] sm:$0xf]
    %v143 = vld [vmem:[#allocation2 + $0xe4] sm:$0xf]
    %v144 = vld [vmem:[#allocation2 + $0xe8] sm:$0xf]
    %v145 = vld [vmem:[#allocation2 + $0xec] sm:$0xf]
    %v146 = vld [vmem:[#allocation2 + $0xf0] sm:$0xf]
    %v147 = vld [vmem:[#allocation2 + $0xf4] sm:$0xf]
    %v148 = vld [vmem:[#allocation2 + $0xf8] sm:$0xf]
    %v149 = vld [vmem:[#allocation2 + $0xfc] sm:$0xf]
    %v150 = vld [vmem:[#allocation5] sm:$0xf]
    %v151 = vld [vmem:[#allocation5 + $0x4] sm:$0xf]
    %v152 = vld [vmem:[#allocation5 + $0x8] sm:$0xf]
    %v153 = vld [vmem:[#allocation5 + $0xc] sm:$0xf]
    %v154 = vld [vmem:[#allocation5 + $0x10] sm:$0xf]
    %v155 = vld [vmem:[#allocation5 + $0x14] sm:$0xf]
    %v156 = vld [vmem:[#allocation5 + $0x18] sm:$0xf]
    %v157 = vld [vmem:[#allocation5 + $0x1c] sm:$0xf]
    %v158 = vld [vmem:[#allocation5 + $0x20] sm:$0xf]
    %v159 = vld [vmem:[#allocation5 + $0x24] sm:$0xf]
    %v160 = vld [vmem:[#allocation5 + $0x28] sm:$0xf]
    %v161 = vld [vmem:[#allocation5 + $0x2c] sm:$0xf]
    %v162 = vld [vmem:[#allocation5 + $0x30] sm:$0xf]
    %v163 = vld [vmem:[#allocation5 + $0x34] sm:$0xf]
    %v164 = vld [vmem:[#allocation5 + $0x38] sm:$0xf]
    %v165 = vld [vmem:[#allocation5 + $0x3c] sm:$0xf]
    %v166 = vld [vmem:[%s2] sm:$0x1]
    %v168 = vlaneseq
    %v169 = vshrl.u32 %v168, 7
    %v170 = vsub.s32 0, %v169
    %v171 = vrot.slane %v166, %v170
    %v237 = vunpack.c.l.b16 %v86
    %v238 = vunpack.c.l.b16 %v87
    %v239 = vunpack.c.l.b16 %v88
    %v240 = vunpack.c.l.b16 %v89
    %v241 = vunpack.c.l.b16 %v90
    %v242 = vunpack.c.l.b16 %v91
    %v243 = vunpack.c.l.b16 %v92
    %v244 = vunpack.c.l.b16 %v93
    %v245 = vunpack.c.l.b16 %v94
    %v246 = vunpack.c.l.b16 %v95
    %v247 = vunpack.c.l.b16 %v96
    %v248 = vunpack.c.l.b16 %v97
    %v249 = vunpack.c.l.b16 %v98
    %v250 = vunpack.c.l.b16 %v99
    %v251 = vunpack.c.l.b16 %v100
    %v252 = vunpack.c.l.b16 %v101
    %v253 = vunpack.c.l.b16 %v102
    %v254 = vunpack.c.l.b16 %v103
    %v255 = vunpack.c.l.b16 %v104
    %v256 = vunpack.c.l.b16 %v105
    %v257 = vunpack.c.l.b16 %v106
    %v258 = vunpack.c.l.b16 %v107
    %v259 = vunpack.c.l.b16 %v108
    %v260 = vunpack.c.l.b16 %v109
    %v261 = vunpack.c.l.b16 %v110
    %v262 = vunpack.c.l.b16 %v111
    %v263 = vunpack.c.l.b16 %v112
    %v264 = vunpack.c.l.b16 %v113
    %v265 = vunpack.c.l.b16 %v114
    %v266 = vunpack.c.l.b16 %v115
    %v267 = vunpack.c.l.b16 %v116
    %v268 = vunpack.c.l.b16 %v117
    %v269 = vunpack.c.l.b16 %v118
    %v270 = vunpack.c.l.b16 %v119
    %v271 = vunpack.c.l.b16 %v120
    %v272 = vunpack.c.l.b16 %v121
    %v273 = vunpack.c.l.b16 %v122
    %v274 = vunpack.c.l.b16 %v123
    %v275 = vunpack.c.l.b16 %v124
    %v276 = vunpack.c.l.b16 %v125
    %v277 = vunpack.c.l.b16 %v126
    %v278 = vunpack.c.l.b16 %v127
    %v279 = vunpack.c.l.b16 %v128
    %v280 = vunpack.c.l.b16 %v129
    %v281 = vunpack.c.l.b16 %v130
    %v282 = vunpack.c.l.b16 %v131
    %v283 = vunpack.c.l.b16 %v132
    %v284 = vunpack.c.l.b16 %v133
    %v285 = vunpack.c.l.b16 %v134
    %v286 = vunpack.c.l.b16 %v135
    %v287 = vunpack.c.l.b16 %v136
    %v288 = vunpack.c.l.b16 %v137
    %v289 = vunpack.c.l.b16 %v138
    %v290 = vunpack.c.l.b16 %v139
    %v291 = vunpack.c.l.b16 %v140
    %v292 = vunpack.c.l.b16 %v141
    %v293 = vunpack.c.l.b16 %v142
    %v294 = vunpack.c.l.b16 %v143
    %v295 = vunpack.c.l.b16 %v144
    %v296 = vunpack.c.l.b16 %v145
    %v297 = vunpack.c.l.b16 %v146
    %v298 = vunpack.c.l.b16 %v147
    %v299 = vunpack.c.l.b16 %v148
    %v300 = vunpack.c.l.b16 %v149
    %v301 = vpack.c.b16 %v238, %v237
    %v302 = vpack.c.b16 %v240, %v239
    %v303 = vpack.c.b16 %v242, %v241
    %v304 = vpack.c.b16 %v244, %v243
    %v305 = vpack.c.b16 %v246, %v245
    %v306 = vpack.c.b16 %v248, %v247
    %v307 = vpack.c.b16 %v250, %v249
    %v308 = vpack.c.b16 %v252, %v251
    %v309 = vpack.c.b16 %v254, %v253
    %v310 = vpack.c.b16 %v256, %v255
    %v311 = vpack.c.b16 %v258, %v257
    %v312 = vpack.c.b16 %v260, %v259
    %v313 = vpack.c.b16 %v262, %v261
    %v314 = vpack.c.b16 %v264, %v263
    %v315 = vpack.c.b16 %v266, %v265
    %v316 = vpack.c.b16 %v268, %v267
    %v317 = vpack.c.b16 %v270, %v269
    %v318 = vpack.c.b16 %v272, %v271
    %v319 = vpack.c.b16 %v274, %v273
    %v320 = vpack.c.b16 %v276, %v275
    %v321 = vpack.c.b16 %v278, %v277
    %v322 = vpack.c.b16 %v280, %v279
    %v323 = vpack.c.b16 %v282, %v281
    %v324 = vpack.c.b16 %v284, %v283
    %v325 = vpack.c.b16 %v286, %v285
    %v326 = vpack.c.b16 %v288, %v287
    %v327 = vpack.c.b16 %v290, %v289
    %v328 = vpack.c.b16 %v292, %v291
    %v329 = vpack.c.b16 %v294, %v293
    %v330 = vpack.c.b16 %v296, %v295
    %v331 = vpack.c.b16 %v298, %v297
    %v332 = vpack.c.b16 %v300, %v299
    %v381 = vunpack.c.l.b16 %v150
    %v382 = vunpack.c.l.b16 %v151
    %v383 = vunpack.c.l.b16 %v152
    %v384 = vunpack.c.l.b16 %v153
    %v385 = vunpack.c.l.b16 %v154
    %v386 = vunpack.c.l.b16 %v155
    %v387 = vunpack.c.l.b16 %v156
    %v388 = vunpack.c.l.b16 %v157
    %v389 = vunpack.c.l.b16 %v158
    %v390 = vunpack.c.l.b16 %v159
    %v391 = vunpack.c.l.b16 %v160
    %v392 = vunpack.c.l.b16 %v161
    %v393 = vunpack.c.l.b16 %v162
    %v394 = vunpack.c.l.b16 %v163
    %v395 = vunpack.c.l.b16 %v164
    %v396 = vunpack.c.l.b16 %v165
    %v397 = vpack.c.b16 %v382, %v381
    %v398 = vpack.c.b16 %v384, %v383
    %v399 = vpack.c.b16 %v386, %v385
    %v400 = vpack.c.b16 %v388, %v387
    %v401 = vpack.c.b16 %v390, %v389
    %v402 = vpack.c.b16 %v392, %v391
    %v403 = vpack.c.b16 %v394, %v393
    %v404 = vpack.c.b16 %v396, %v395
    %413 = vmatprep.subr.bf16.mxu0 0
    %414 = vmatpush1.bf16.msra.mxu0 %v397
    %415 = vmatprep.subr.bf16.mxu0 0
    %416 = vmatpush1.bf16.msra.mxu0 %v398
    %417 = vmatprep.subr.bf16.mxu0 0
    %418 = vmatpush1.bf16.msra.mxu0 %v399
    %419 = vmatprep.subr.bf16.mxu0 0
    %420 = vmatpush1.bf16.msra.mxu0 %v400
    %421 = vmatprep.subr.bf16.mxu0 0
    %422 = vmatpush1.bf16.msra.mxu0 %v401
    %423 = vmatprep.subr.bf16.mxu0 0
    %424 = vmatpush1.bf16.msra.mxu0 %v402
    %425 = vmatprep.subr.bf16.mxu0 0
    %426 = vmatpush1.bf16.msra.mxu0 %v403
    %427 = vmatprep.subr.bf16.mxu0 0
    %428 = vmatpush1.bf16.msra.mxu0 %v404
    %429 = vmatprep.subr.bf16.mxu0 0
    %430 = vmatpush1.bf16.msra.mxu0 0
    %431 = vmatprep.subr.bf16.mxu0 0
    %432 = vmatpush1.bf16.msra.mxu0 0
    %433 = vmatprep.subr.bf16.mxu0 0
    %434 = vmatpush1.bf16.msra.mxu0 0
    %435 = vmatprep.subr.bf16.mxu0 0
    %436 = vmatpush1.bf16.msra.mxu0 0
    %437 = vmatprep.subr.bf16.mxu0 0
    %438 = vmatpush1.bf16.msra.mxu0 0
    %439 = vmatprep.subr.bf16.mxu0 0
    %440 = vmatpush1.bf16.msra.mxu0 0
    %441 = vmatprep.subr.bf16.mxu0 0
    %442 = vmatpush1.bf16.msra.mxu0 0
    %443 = vmatprep.subr.bf16.mxu0 0
    %444 = vmatpush1.bf16.msra.mxu0 0
    %445 = vmatprep.mubr.bf16.mxu0 0
    %446 = vmatmul.mubr.bf16.gmra.mrb[0].mxu0 %v301
    %v447 = vpop.f32.mrb[0].mxu0
    %v448 = vadd.f32 %v171, %v447
    %v449 = vpop.f32.mrb[0].mxu0
    %v450 = vpop.f32.mrb[0].mxu0
    %v451 = vadd.f32 %v171, %v450
    %v452 = vpop.f32.mrb[0].mxu0
    %453 = vmatprep.mubr.bf16.mxu0 0
    %454 = vmatmul.mubr.bf16.gmra.mrb[0].mxu0 %v302
    %v455 = vpop.f32.mrb[0].mxu0
    %v456 = vadd.f32 %v171, %v455
    %v457 = vpop.f32.mrb[0].mxu0
    %v458 = vpop.f32.mrb[0].mxu0
    %v459 = vadd.f32 %v171, %v458
    %v460 = vpop.f32.mrb[0].mxu0
    %461 = vmatprep.mubr.bf16.mxu0 0
    %462 = vmatmul.mubr.bf16.gmra.mrb[0].mxu0 %v303
    %v463 = vpop.f32.mrb[0].mxu0
    %v464 = vadd.f32 %v171, %v463
    %v465 = vpop.f32.mrb[0].mxu0
    %v466 = vpop.f32.mrb[0].mxu0
    %v467 = vadd.f32 %v171, %v466
    %v468 = vpop.f32.mrb[0].mxu0
    %469 = vmatprep.mubr.bf16.mxu0 0
    %470 = vmatmul.mubr.bf16.gmra.mrb[0].mxu0 %v304
    %v471 = vpop.f32.mrb[0].mxu0
    %v472 = vadd.f32 %v171, %v471
    %v473 = vpop.f32.mrb[0].mxu0
    %v474 = vpop.f32.mrb[0].mxu0
    %v475 = vadd.f32 %v171, %v474
    %v476 = vpop.f32.mrb[0].mxu0
    %477 = vmatprep.mubr.bf16.mxu0 0
    %478 = vmatmul.mubr.bf16.gmra.mrb[0].mxu0 %v305
    %v479 = vpop.f32.mrb[0].mxu0
    %v480 = vadd.f32 %v171, %v479
    %v481 = vpop.f32.mrb[0].mxu0
    %v482 = vpop.f32.mrb[0].mxu0
    %v483 = vadd.f32 %v171, %v482
    %v484 = vpop.f32.mrb[0].mxu0
    %485 = vmatprep.mubr.bf16.mxu0 0
    %486 = vmatmul.mubr.bf16.gmra.mrb[0].mxu0 %v306
    %v487 = vpop.f32.mrb[0].mxu0
    %v488 = vadd.f32 %v171, %v487
    %v489 = vpop.f32.mrb[0].mxu0
    %v490 = vpop.f32.mrb[0].mxu0
    %v491 = vadd.f32 %v171, %v490
    %v492 = vpop.f32.mrb[0].mxu0
    %493 = vmatprep.mubr.bf16.mxu0 0
    %494 = vmatmul.mubr.bf16.gmra.mrb[0].mxu0 %v307
    %v495 = vpop.f32.mrb[0].mxu0
    %v496 = vadd.f32 %v171, %v495
    %v497 = vpop.f32.mrb[0].mxu0
    %v498 = vpop.f32.mrb[0].mxu0
    %v499 = vadd.f32 %v171, %v498
    %v500 = vpop.f32.mrb[0].mxu0
    %501 = vmatprep.mubr.bf16.mxu0 0
    %502 = vmatmul.mubr.bf16.gmra.mrb[0].mxu0 %v308
    %v503 = vpop.f32.mrb[0].mxu0
    %v504 = vadd.f32 %v171, %v503
    %v505 = vpop.f32.mrb[0].mxu0
    %v506 = vpop.f32.mrb[0].mxu0
    %v507 = vadd.f32 %v171, %v506
    %v508 = vpop.f32.mrb[0].mxu0
    %509 = vmatprep.mubr.bf16.mxu0 0
    %510 = vmatmul.mubr.bf16.gmra.mrb[0].mxu0 %v309
    %v511 = vpop.f32.mrb[0].mxu0
    %v512 = vadd.f32 %v171, %v511
    %v513 = vpop.f32.mrb[0].mxu0
    %v514 = vpop.f32.mrb[0].mxu0
    %v515 = vadd.f32 %v171, %v514
    %v516 = vpop.f32.mrb[0].mxu0
    %517 = vmatprep.mubr.bf16.mxu0 0
    %518 = vmatmul.mubr.bf16.gmra.mrb[0].mxu0 %v310
    %v519 = vpop.f32.mrb[0].mxu0
    %v520 = vadd.f32 %v171, %v519
    %v521 = vpop.f32.mrb[0].mxu0
    %v522 = vpop.f32.mrb[0].mxu0
    %v523 = vadd.f32 %v171, %v522
    %v524 = vpop.f32.mrb[0].mxu0
    %525 = vmatprep.mubr.bf16.mxu0 0
    %526 = vmatmul.mubr.bf16.gmra.mrb[0].mxu0 %v311
    %v527 = vpop.f32.mrb[0].mxu0
    %v528 = vadd.f32 %v171, %v527
    %v529 = vpop.f32.mrb[0].mxu0
    %v530 = vpop.f32.mrb[0].mxu0
    %v531 = vadd.f32 %v171, %v530
    %v532 = vpop.f32.mrb[0].mxu0
    %533 = vmatprep.mubr.bf16.mxu0 0
    %534 = vmatmul.mubr.bf16.gmra.mrb[0].mxu0 %v312
    %v535 = vpop.f32.mrb[0].mxu0
    %v536 = vadd.f32 %v171, %v535
    %v537 = vpop.f32.mrb[0].mxu0
    %v538 = vpop.f32.mrb[0].mxu0
    %v539 = vadd.f32 %v171, %v538
    %v540 = vpop.f32.mrb[0].mxu0
    %541 = vmatprep.mubr.bf16.mxu0 0
    %542 = vmatmul.mubr.bf16.gmra.mrb[0].mxu0 %v313
    %v543 = vpop.f32.mrb[0].mxu0
    %v544 = vadd.f32 %v171, %v543
    %v545 = vpop.f32.mrb[0].mxu0
    %v546 = vpop.f32.mrb[0].mxu0
    %v547 = vadd.f32 %v171, %v546
    %v548 = vpop.f32.mrb[0].mxu0
    %549 = vmatprep.mubr.bf16.mxu0 0
    %550 = vmatmul.mubr.bf16.gmra.mrb[0].mxu0 %v314
    %v551 = vpop.f32.mrb[0].mxu0
    %v552 = vadd.f32 %v171, %v551
    %v553 = vpop.f32.mrb[0].mxu0
    %v554 = vpop.f32.mrb[0].mxu0
    %v555 = vadd.f32 %v171, %v554
    %v556 = vpop.f32.mrb[0].mxu0
    %557 = vmatprep.mubr.bf16.mxu0 0
    %558 = vmatmul.mubr.bf16.gmra.mrb[0].mxu0 %v315
    %v559 = vpop.f32.mrb[0].mxu0
    %v560 = vadd.f32 %v171, %v559
    %v561 = vpop.f32.mrb[0].mxu0
    %v562 = vpop.f32.mrb[0].mxu0
    %v563 = vadd.f32 %v171, %v562
    %v564 = vpop.f32.mrb[0].mxu0
    %565 = vmatprep.mubr.bf16.mxu0 0
    %566 = vmatmul.mubr.bf16.gmra.mrb[0].mxu0 %v316
    %v567 = vpop.f32.mrb[0].mxu0
    %v568 = vadd.f32 %v171, %v567
    %v569 = vpop.f32.mrb[0].mxu0
    %v570 = vpop.f32.mrb[0].mxu0
    %v571 = vadd.f32 %v171, %v570
    %v572 = vpop.f32.mrb[0].mxu0
    %573 = vmatprep.mubr.bf16.mxu0 0
    %574 = vmatmul.mubr.bf16.gmra.mrb[0].mxu0 %v317
    %v575 = vpop.f32.mrb[0].mxu0
    %v576 = vadd.f32 %v171, %v575
    %v577 = vpop.f32.mrb[0].mxu0
    %v578 = vpop.f32.mrb[0].mxu0
    %v579 = vadd.f32 %v171, %v578
    %v580 = vpop.f32.mrb[0].mxu0
    %581 = vmatprep.mubr.bf16.mxu0 0
    %582 = vmatmul.mubr.bf16.gmra.mrb[0].mxu0 %v318
    %v583 = vpop.f32.mrb[0].mxu0
    %v584 = vadd.f32 %v171, %v583
    %v585 = vpop.f32.mrb[0].mxu0
    %v586 = vpop.f32.mrb[0].mxu0
    %v587 = vadd.f32 %v171, %v586
    %v588 = vpop.f32.mrb[0].mxu0
    %589 = vmatprep.mubr.bf16.mxu0 0
    %590 = vmatmul.mubr.bf16.gmra.mrb[0].mxu0 %v319
    %v591 = vpop.f32.mrb[0].mxu0
    %v592 = vadd.f32 %v171, %v591
    %v593 = vpop.f32.mrb[0].mxu0
    %v594 = vpop.f32.mrb[0].mxu0
    %v595 = vadd.f32 %v171, %v594
    %v596 = vpop.f32.mrb[0].mxu0
    %597 = vmatprep.mubr.bf16.mxu0 0
    %598 = vmatmul.mubr.bf16.gmra.mrb[0].mxu0 %v320
    %v599 = vpop.f32.mrb[0].mxu0
    %v600 = vadd.f32 %v171, %v599
    %v601 = vpop.f32.mrb[0].mxu0
    %v602 = vpop.f32.mrb[0].mxu0
    %v603 = vadd.f32 %v171, %v602
    %v604 = vpop.f32.mrb[0].mxu0
    %605 = vmatprep.mubr.bf16.mxu0 0
    %606 = vmatmul.mubr.bf16.gmra.mrb[0].mxu0 %v321
    %v607 = vpop.f32.mrb[0].mxu0
    %v608 = vadd.f32 %v171, %v607
    %v609 = vpop.f32.mrb[0].mxu0
    %v610 = vpop.f32.mrb[0].mxu0
    %v611 = vadd.f32 %v171, %v610
    %v612 = vpop.f32.mrb[0].mxu0
    %613 = vmatprep.mubr.bf16.mxu0 0
    %614 = vmatmul.mubr.bf16.gmra.mrb[0].mxu0 %v322
    %v615 = vpop.f32.mrb[0].mxu0
    %v616 = vadd.f32 %v171, %v615
    %v617 = vpop.f32.mrb[0].mxu0
    %v618 = vpop.f32.mrb[0].mxu0
    %v619 = vadd.f32 %v171, %v618
    %v620 = vpop.f32.mrb[0].mxu0
    %621 = vmatprep.mubr.bf16.mxu0 0
    %622 = vmatmul.mubr.bf16.gmra.mrb[0].mxu0 %v323
    %v623 = vpop.f32.mrb[0].mxu0
    %v624 = vadd.f32 %v171, %v623
    %v625 = vpop.f32.mrb[0].mxu0
    %v626 = vpop.f32.mrb[0].mxu0
    %v627 = vadd.f32 %v171, %v626
    %v628 = vpop.f32.mrb[0].mxu0
    %629 = vmatprep.mubr.bf16.mxu0 0
    %630 = vmatmul.mubr.bf16.gmra.mrb[0].mxu0 %v324
    %v631 = vpop.f32.mrb[0].mxu0
    %v632 = vadd.f32 %v171, %v631
    %v633 = vpop.f32.mrb[0].mxu0
    %v634 = vpop.f32.mrb[0].mxu0
    %v635 = vadd.f32 %v171, %v634
    %v636 = vpop.f32.mrb[0].mxu0
    %637 = vmatprep.mubr.bf16.mxu0 0
    %638 = vmatmul.mubr.bf16.gmra.mrb[0].mxu0 %v325
    %v639 = vpop.f32.mrb[0].mxu0
    %v640 = vadd.f32 %v171, %v639
    %v641 = vpop.f32.mrb[0].mxu0
    %v642 = vpop.f32.mrb[0].mxu0
    %v643 = vadd.f32 %v171, %v642
    %v644 = vpop.f32.mrb[0].mxu0
    %645 = vmatprep.mubr.bf16.mxu0 0
    %646 = vmatmul.mubr.bf16.gmra.mrb[0].mxu0 %v326
    %v647 = vpop.f32.mrb[0].mxu0
    %v648 = vadd.f32 %v171, %v647
    %v649 = vpop.f32.mrb[0].mxu0
    %v650 = vpop.f32.mrb[0].mxu0
    %v651 = vadd.f32 %v171, %v650
    %v652 = vpop.f32.mrb[0].mxu0
    %653 = vmatprep.mubr.bf16.mxu0 0
    %654 = vmatmul.mubr.bf16.gmra.mrb[0].mxu0 %v327
    %v655 = vpop.f32.mrb[0].mxu0
    %v656 = vadd.f32 %v171, %v655
    %v657 = vpop.f32.mrb[0].mxu0
    %v658 = vpop.f32.mrb[0].mxu0
    %v659 = vadd.f32 %v171, %v658
    %v660 = vpop.f32.mrb[0].mxu0
    %661 = vmatprep.mubr.bf16.mxu0 0
    %662 = vmatmul.mubr.bf16.gmra.mrb[0].mxu0 %v328
    %v663 = vpop.f32.mrb[0].mxu0
    %v664 = vadd.f32 %v171, %v663
    %v665 = vpop.f32.mrb[0].mxu0
    %v666 = vpop.f32.mrb[0].mxu0
    %v667 = vadd.f32 %v171, %v666
    %v668 = vpop.f32.mrb[0].mxu0
    %669 = vmatprep.mubr.bf16.mxu0 0
    %670 = vmatmul.mubr.bf16.gmra.mrb[0].mxu0 %v329
    %v671 = vpop.f32.mrb[0].mxu0
    %v672 = vadd.f32 %v171, %v671
    %v673 = vpop.f32.mrb[0].mxu0
    %v674 = vpop.f32.mrb[0].mxu0
    %v675 = vadd.f32 %v171, %v674
    %v676 = vpop.f32.mrb[0].mxu0
    %677 = vmatprep.mubr.bf16.mxu0 0
    %678 = vmatmul.mubr.bf16.gmra.mrb[0].mxu0 %v330
    %v679 = vpop.f32.mrb[0].mxu0
    %v680 = vadd.f32 %v171, %v679
    %v681 = vpop.f32.mrb[0].mxu0
    %v682 = vpop.f32.mrb[0].mxu0
    %v683 = vadd.f32 %v171, %v682
    %v684 = vpop.f32.mrb[0].mxu0
    %685 = vmatprep.mubr.bf16.mxu0 0
    %686 = vmatmul.mubr.bf16.gmra.mrb[0].mxu0 %v331
    %v687 = vpop.f32.mrb[0].mxu0
    %v688 = vadd.f32 %v171, %v687
    %v689 = vpop.f32.mrb[0].mxu0
    %v690 = vpop.f32.mrb[0].mxu0
    %v691 = vadd.f32 %v171, %v690
    %v692 = vpop.f32.mrb[0].mxu0
    %693 = vmatprep.mubr.bf16.mxu0 0
    %694 = vmatmul.mubr.bf16.gmra.mrb[0].mxu0 %v332
    %v695 = vpop.f32.mrb[0].mxu0
    %v696 = vadd.f32 %v171, %v695
    %v697 = vpop.f32.mrb[0].mxu0
    %v698 = vpop.f32.mrb[0].mxu0
    %v699 = vadd.f32 %v171, %v698
    %v700 = vpop.f32.mrb[0].mxu0
    %701 = vdwg.mxu0
    %v702 = vmax.f32 %v448, 0.0
    %v703 = vmax.f32 %v451, 0.0
    %v704 = vmax.f32 %v456, 0.0
    %v705 = vmax.f32 %v459, 0.0
    %v706 = vmax.f32 %v464, 0.0
    %v707 = vmax.f32 %v467, 0.0
    %v708 = vmax.f32 %v472, 0.0
    %v709 = vmax.f32 %v475, 0.0
    %v710 = vmax.f32 %v480, 0.0
    %v711 = vmax.f32 %v483, 0.0
    %v712 = vmax.f32 %v488, 0.0
    %v713 = vmax.f32 %v491, 0.0
    %v714 = vmax.f32 %v496, 0.0
    %v715 = vmax.f32 %v499, 0.0
    %v716 = vmax.f32 %v504, 0.0
    %v717 = vmax.f32 %v507, 0.0
    %v718 = vmax.f32 %v512, 0.0
    %v719 = vmax.f32 %v515, 0.0
    %v720 = vmax.f32 %v520, 0.0
    %v721 = vmax.f32 %v523, 0.0
    %v722 = vmax.f32 %v528, 0.0
    %v723 = vmax.f32 %v531, 0.0
    %v724 = vmax.f32 %v536, 0.0
    %v725 = vmax.f32 %v539, 0.0
    %v726 = vmax.f32 %v544, 0.0
    %v727 = vmax.f32 %v547, 0.0
    %v728 = vmax.f32 %v552, 0.0
    %v729 = vmax.f32 %v555, 0.0
    %v730 = vmax.f32 %v560, 0.0
    %v731 = vmax.f32 %v563, 0.0
    %v732 = vmax.f32 %v568, 0.0
    %v733 = vmax.f32 %v571, 0.0
    %v734 = vmax.f32 %v576, 0.0
    %v735 = vmax.f32 %v579, 0.0
    %v736 = vmax.f32 %v584, 0.0
    %v737 = vmax.f32 %v587, 0.0
    %v738 = vmax.f32 %v592, 0.0
    %v739 = vmax.f32 %v595, 0.0
    %v740 = vmax.f32 %v600, 0.0
    %v741 = vmax.f32 %v603, 0.0
    %v742 = vmax.f32 %v608, 0.0
    %v743 = vmax.f32 %v611, 0.0
    %v744 = vmax.f32 %v616, 0.0
    %v745 = vmax.f32 %v619, 0.0
    %v746 = vmax.f32 %v624, 0.0
    %v747 = vmax.f32 %v627, 0.0
    %v748 = vmax.f32 %v632, 0.0
    %v749 = vmax.f32 %v635, 0.0
    %v750 = vmax.f32 %v640, 0.0
    %v751 = vmax.f32 %v643, 0.0
    %v752 = vmax.f32 %v648, 0.0
    %v753 = vmax.f32 %v651, 0.0
    %v754 = vmax.f32 %v656, 0.0
    %v755 = vmax.f32 %v659, 0.0
    %v756 = vmax.f32 %v664, 0.0
    %v757 = vmax.f32 %v667, 0.0
    %v758 = vmax.f32 %v672, 0.0
    %v759 = vmax.f32 %v675, 0.0
    %v760 = vmax.f32 %v680, 0.0
    %v761 = vmax.f32 %v683, 0.0
    %v762 = vmax.f32 %v688, 0.0
    %v763 = vmax.f32 %v691, 0.0
    %v764 = vmax.f32 %v696, 0.0
    %v765 = vmax.f32 %v699, 0.0
    %v766 = vld [vmem:[%s3] sm:$0xff]
    %v768 = vcombine.high %v766, %v766
    %v770 = vunpack.c.l.s4 1983009808
    %v771 = vunpack.c.0.s8 %v770
    %v772 = vlaneseq
    %v773 = vshrl.u32 %v772, 7
    %v774 = vsub.s32 %v771, %v773
    %v775 = vrot.slane %v766, %v774
    %v777 = vunpack.c.l.s4 1983009808
    %v778 = vunpack.c.0.s8 %v777
    %v779 = vlaneseq
    %v780 = vshrl.u32 %v779, 7
    %v781 = vsub.s32 %v778, %v780
    %v782 = vrot.slane %v768, %v781
    %v783 = vcombine.high %v775, %v775
    %v784 = vcombine.high %v782, %v782
    %789 = vmatprep.subr.mxu0 0.0
    %790 = vmatpush1.msra.mxu0 %v702
    %791 = vmatprep.subr.mxu0 0.0
    %792 = vmatpush1.msra.mxu0 %v703
    %793 = vmatprep.subr.mxu0 0.0
    %794 = vmatpush1.msra.mxu0 %v704
    %795 = vmatprep.subr.mxu0 0.0
    %796 = vmatpush1.msra.mxu0 %v705
    %797 = vmatprep.subr.mxu0 0.0
    %798 = vmatpush1.msra.mxu0 %v706
    %799 = vmatprep.subr.mxu0 0.0
    %800 = vmatpush1.msra.mxu0 %v707
    %801 = vmatprep.subr.mxu0 0.0
    %802 = vmatpush1.msra.mxu0 %v708
    %803 = vmatprep.subr.mxu0 0.0
    %804 = vmatpush1.msra.mxu0 %v709
    %805 = vmatprep.subr.mxu0 0.0
    %806 = vmatpush1.msra.mxu0 %v710
    %807 = vmatprep.subr.mxu0 0.0
    %808 = vmatpush1.msra.mxu0 %v711
    %809 = vmatprep.subr.mxu0 0.0
    %810 = vmatpush1.msra.mxu0 %v712
    %811 = vmatprep.subr.mxu0 0.0
    %812 = vmatpush1.msra.mxu0 %v713
    %813 = vmatprep.subr.mxu0 0.0
    %814 = vmatpush1.msra.mxu0 %v714
    %815 = vmatprep.subr.mxu0 0.0
    %816 = vmatpush1.msra.mxu0 %v715
    %817 = vmatprep.subr.mxu0 0.0
    %818 = vmatpush1.msra.mxu0 %v716
    %819 = vmatprep.subr.mxu0 0.0
    %820 = vmatpush1.msra.mxu0 %v717
    %821 = vmatprep.subr.mxu0 0.0
    %822 = vmatpush1.msra.mxu0 %v718
    %823 = vmatprep.subr.mxu0 0.0
    %824 = vmatpush1.msra.mxu0 %v719
    %825 = vmatprep.subr.mxu0 0.0
    %826 = vmatpush1.msra.mxu0 %v720
    %827 = vmatprep.subr.mxu0 0.0
    %828 = vmatpush1.msra.mxu0 %v721
    %829 = vmatprep.subr.mxu0 0.0
    %830 = vmatpush1.msra.mxu0 %v722
    %831 = vmatprep.subr.mxu0 0.0
    %832 = vmatpush1.msra.mxu0 %v723
    %833 = vmatprep.subr.mxu0 0.0
    %834 = vmatpush1.msra.mxu0 %v724
    %835 = vmatprep.subr.mxu0 0.0
    %836 = vmatpush1.msra.mxu0 %v725
    %837 = vmatprep.subr.mxu0 0.0
    %838 = vmatpush1.msra.mxu0 %v726
    %839 = vmatprep.subr.mxu0 0.0
    %840 = vmatpush1.msra.mxu0 %v727
    %841 = vmatprep.subr.mxu0 0.0
    %842 = vmatpush1.msra.mxu0 %v728
    %843 = vmatprep.subr.mxu0 0.0
    %844 = vmatpush1.msra.mxu0 %v729
    %845 = vmatprep.subr.mxu0 0.0
    %846 = vmatpush1.msra.mxu0 %v730
    %847 = vmatprep.subr.mxu0 0.0
    %848 = vmatpush1.msra.mxu0 %v731
    %849 = vmatprep.subr.mxu0 0.0
    %850 = vmatpush1.msra.mxu0 %v732
    %851 = vmatprep.subr.mxu0 0.0
    %852 = vmatpush1.msra.mxu0 %v733
    %853 = vmatprep.mubr.f32.mxu0 %v783
    %854 = vmatmul.mubr.f32.gmra.mrb[0].mxu0 %v775
    %v855 = vpop.f32.mrb[0].mxu0
    %v856 = vadd.f32 0.0, %v855
    %v857 = vpop.f32.mrb[0].mxu0
    %858 = vdwg.mxu0
    %859 = vmatprep.subr.mxu0 0.0
    %860 = vmatpush1.msra.mxu0 %v734
    %861 = vmatprep.subr.mxu0 0.0
    %862 = vmatpush1.msra.mxu0 %v735
    %863 = vmatprep.subr.mxu0 0.0
    %864 = vmatpush1.msra.mxu0 %v736
    %865 = vmatprep.subr.mxu0 0.0
    %866 = vmatpush1.msra.mxu0 %v737
    %867 = vmatprep.subr.mxu0 0.0
    %868 = vmatpush1.msra.mxu0 %v738
    %869 = vmatprep.subr.mxu0 0.0
    %870 = vmatpush1.msra.mxu0 %v739
    %871 = vmatprep.subr.mxu0 0.0
    %872 = vmatpush1.msra.mxu0 %v740
    %873 = vmatprep.subr.mxu0 0.0
    %874 = vmatpush1.msra.mxu0 %v741
    %875 = vmatprep.subr.mxu0 0.0
    %876 = vmatpush1.msra.mxu0 %v742
    %877 = vmatprep.subr.mxu0 0.0
    %878 = vmatpush1.msra.mxu0 %v743
    %879 = vmatprep.subr.mxu0 0.0
    %880 = vmatpush1.msra.mxu0 %v744
    %881 = vmatprep.subr.mxu0 0.0
    %882 = vmatpush1.msra.mxu0 %v745
    %883 = vmatprep.subr.mxu0 0.0
    %884 = vmatpush1.msra.mxu0 %v746
    %885 = vmatprep.subr.mxu0 0.0
    %886 = vmatpush1.msra.mxu0 %v747
    %887 = vmatprep.subr.mxu0 0.0
    %888 = vmatpush1.msra.mxu0 %v748
    %889 = vmatprep.subr.mxu0 0.0
    %890 = vmatpush1.msra.mxu0 %v749
    %891 = vmatprep.subr.mxu0 0.0
    %892 = vmatpush1.msra.mxu0 %v750
    %893 = vmatprep.subr.mxu0 0.0
    %894 = vmatpush1.msra.mxu0 %v751
    %895 = vmatprep.subr.mxu0 0.0
    %896 = vmatpush1.msra.mxu0 %v752
    %897 = vmatprep.subr.mxu0 0.0
    %898 = vmatpush1.msra.mxu0 %v753
    %899 = vmatprep.subr.mxu0 0.0
    %900 = vmatpush1.msra.mxu0 %v754
    %901 = vmatprep.subr.mxu0 0.0
    %902 = vmatpush1.msra.mxu0 %v755
    %903 = vmatprep.subr.mxu0 0.0
    %904 = vmatpush1.msra.mxu0 %v756
    %905 = vmatprep.subr.mxu0 0.0
    %906 = vmatpush1.msra.mxu0 %v757
    %907 = vmatprep.subr.mxu0 0.0
    %908 = vmatpush1.msra.mxu0 %v758
    %909 = vmatprep.subr.mxu0 0.0
    %910 = vmatpush1.msra.mxu0 %v759
    %911 = vmatprep.subr.mxu0 0.0
    %912 = vmatpush1.msra.mxu0 %v760
    %913 = vmatprep.subr.mxu0 0.0
    %914 = vmatpush1.msra.mxu0 %v761
    %915 = vmatprep.subr.mxu0 0.0
    %916 = vmatpush1.msra.mxu0 %v762
    %917 = vmatprep.subr.mxu0 0.0
    %918 = vmatpush1.msra.mxu0 %v763
    %919 = vmatprep.subr.mxu0 0.0
    %920 = vmatpush1.msra.mxu0 %v764
    %921 = vmatprep.subr.mxu0 0.0
    %922 = vmatpush1.msra.mxu0 %v765
    %923 = vmatprep.mubr.f32.mxu0 %v784
    %924 = vmatmul.mubr.f32.gmra.mrb[0].mxu0 %v782
    %v925 = vpop.f32.mrb[0].mxu0
    %v926 = vadd.f32 %v856, %v925
    %v927 = vpop.f32.mrb[0].mxu0
    %928 = vdwg.mxu0
    %v929 = vld [vmem:[#allocation7] sm:$0xff]
    %v930 = vld [vmem:[#allocation7 + $0x8] sm:$0xff]
    %v931 = vld [vmem:[#allocation7 + $0x10] sm:$0xff]
    %v932 = vld [vmem:[#allocation7 + $0x18] sm:$0xff]
    %v933 = vld [vmem:[#allocation7 + $0x20] sm:$0xff]
    %v934 = vld [vmem:[#allocation7 + $0x28] sm:$0xff]
    %v935 = vld [vmem:[#allocation7 + $0x30] sm:$0xff]
    %v936 = vld [vmem:[#allocation7 + $0x38] sm:$0xff]
    %v937 = vld [vmem:[#allocation7 + $0x40] sm:$0xff]
    %v938 = vld [vmem:[#allocation7 + $0x48] sm:$0xff]
    %v939 = vld [vmem:[#allocation7 + $0x50] sm:$0xff]
    %v940 = vld [vmem:[#allocation7 + $0x58] sm:$0xff]
    %v941 = vld [vmem:[#allocation7 + $0x60] sm:$0xff]
    %v942 = vld [vmem:[#allocation7 + $0x68] sm:$0xff]
    %v943 = vld [vmem:[#allocation7 + $0x70] sm:$0xff]
    %v944 = vld [vmem:[#allocation7 + $0x78] sm:$0xff]
    %v945 = vld [vmem:[%s4] sm:$0x3]
    %v946 = vld [vmem:[#allocation8] sm:$0xff]
    %v947 = vld [vmem:[#allocation8 + $0x8] sm:$0xff]
    %v948 = vld [vmem:[#allocation8 + $0x10] sm:$0xff]
    %v949 = vld [vmem:[#allocation8 + $0x18] sm:$0xff]
    %v950 = vld [vmem:[#allocation8 + $0x20] sm:$0xff]
    %v951 = vld [vmem:[#allocation8 + $0x28] sm:$0xff]
    %v952 = vld [vmem:[#allocation8 + $0x30] sm:$0xff]
    %v953 = vld [vmem:[#allocation8 + $0x38] sm:$0xff]
    %v954 = vld [vmem:[#allocation8 + $0x40] sm:$0xff]
    %v955 = vld [vmem:[#allocation8 + $0x48] sm:$0xff]
    %v956 = vld [vmem:[#allocation8 + $0x50] sm:$0xff]
    %v957 = vld [vmem:[#allocation8 + $0x58] sm:$0xff]
    %v958 = vld [vmem:[#allocation8 + $0x60] sm:$0xff]
    %v959 = vld [vmem:[#allocation8 + $0x68] sm:$0xff]
    %v960 = vld [vmem:[#allocation8 + $0x70] sm:$0xff]
    %v961 = vld [vmem:[#allocation8 + $0x78] sm:$0xff]
    %962 = vmatprep.subr.mxu0 0.0
    %963 = vmatpush1.msra.mxu0 %v946
    %964 = vmatprep.subr.mxu0 0.0
    %965 = vmatpush1.msra.mxu0 %v947
    %966 = vmatprep.subr.mxu0 0.0
    %967 = vmatpush1.msra.mxu0 %v948
    %968 = vmatprep.subr.mxu0 0.0
    %969 = vmatpush1.msra.mxu0 %v949
    %970 = vmatprep.subr.mxu0 0.0
    %971 = vmatpush1.msra.mxu0 %v950
    %972 = vmatprep.subr.mxu0 0.0
    %973 = vmatpush1.msra.mxu0 %v951
    %974 = vmatprep.subr.mxu0 0.0
    %975 = vmatpush1.msra.mxu0 %v952
    %976 = vmatprep.subr.mxu0 0.0
    %977 = vmatpush1.msra.mxu0 %v953
    %978 = vmatprep.subr.mxu0 0.0
    %979 = vmatpush1.msra.mxu0 %v954
    %980 = vmatprep.subr.mxu0 0.0
    %981 = vmatpush1.msra.mxu0 %v955
    %982 = vmatprep.subr.mxu0 0.0
    %983 = vmatpush1.msra.mxu0 %v956
    %984 = vmatprep.subr.mxu0 0.0
    %985 = vmatpush1.msra.mxu0 %v957
    %986 = vmatprep.subr.mxu0 0.0
    %987 = vmatpush1.msra.mxu0 %v958
    %988 = vmatprep.subr.mxu0 0.0
    %989 = vmatpush1.msra.mxu0 %v959
    %990 = vmatprep.subr.mxu0 0.0
    %991 = vmatpush1.msra.mxu0 %v960
    %992 = vmatprep.subr.mxu0 0.0
    %993 = vmatpush1.msra.mxu0 %v961
    %994 = vmatprep.subr.mxu0 0.0
    %995 = vmatpush1.msra.mxu0 0.0
    %996 = vmatprep.subr.mxu0 0.0
    %997 = vmatpush1.msra.mxu0 0.0
    %998 = vmatprep.subr.mxu0 0.0
    %999 = vmatpush1.msra.mxu0 0.0
    %1000 = vmatprep.subr.mxu0 0.0
    %1001 = vmatpush1.msra.mxu0 0.0
    %1002 = vmatprep.subr.mxu0 0.0
    %1003 = vmatpush1.msra.mxu0 0.0
    %1004 = vmatprep.subr.mxu0 0.0
    %1005 = vmatpush1.msra.mxu0 0.0
    %1006 = vmatprep.subr.mxu0 0.0
    %1007 = vmatpush1.msra.mxu0 0.0
    %1008 = vmatprep.subr.mxu0 0.0
    %1009 = vmatpush1.msra.mxu0 0.0
    %1010 = vmatprep.subr.mxu0 0.0
    %1011 = vmatpush1.msra.mxu0 0.0
    %1012 = vmatprep.subr.mxu0 0.0
    %1013 = vmatpush1.msra.mxu0 0.0
    %1014 = vmatprep.subr.mxu0 0.0
    %1015 = vmatpush1.msra.mxu0 0.0
    %1016 = vmatprep.subr.mxu0 0.0
    %1017 = vmatpush1.msra.mxu0 0.0
    %1018 = vmatprep.subr.mxu0 0.0
    %1019 = vmatpush1.msra.mxu0 0.0
    %1020 = vmatprep.subr.mxu0 0.0
    %1021 = vmatpush1.msra.mxu0 0.0
    %1022 = vmatprep.subr.mxu0 0.0
    %1023 = vmatpush1.msra.mxu0 0.0
    %1024 = vmatprep.subr.mxu0 0.0
    %1025 = vmatpush1.msra.mxu0 0.0
    %1026 = vmatprep.mubr.f32.mxu0 0.0
    %1027 = vmatmul.mubr.f32.gmra.mrb[0].mxu0 %v945
    %v1028 = vpop.f32.mrb[0].mxu0
    %v1029 = vadd.f32 0.0, %v1028
    %v1030 = vpop.f32.mrb[0].mxu0
    %1031 = vdwg.mxu0
    %1032 = vmatprep.subr.mxu0 0.0
    %1033 = vmatpush1.msra.mxu0 %v929
    %1034 = vmatprep.subr.mxu0 0.0
    %1035 = vmatpush1.msra.mxu0 %v930
    %1036 = vmatprep.subr.mxu0 0.0
    %1037 = vmatpush1.msra.mxu0 %v931
    %1038 = vmatprep.subr.mxu0 0.0
    %1039 = vmatpush1.msra.mxu0 %v932
    %1040 = vmatprep.subr.mxu0 0.0
    %1041 = vmatpush1.msra.mxu0 %v933
    %1042 = vmatprep.subr.mxu0 0.0
    %1043 = vmatpush1.msra.mxu0 %v934
    %1044 = vmatprep.subr.mxu0 0.0
    %1045 = vmatpush1.msra.mxu0 %v935
    %1046 = vmatprep.subr.mxu0 0.0
    %1047 = vmatpush1.msra.mxu0 %v936
    %1048 = vmatprep.subr.mxu0 0.0
    %1049 = vmatpush1.msra.mxu0 %v937
    %1050 = vmatprep.subr.mxu0 0.0
    %1051 = vmatpush1.msra.mxu0 %v938
    %1052 = vmatprep.subr.mxu0 0.0
    %1053 = vmatpush1.msra.mxu0 %v939
    %1054 = vmatprep.subr.mxu0 0.0
    %1055 = vmatpush1.msra.mxu0 %v940
    %1056 = vmatprep.subr.mxu0 0.0
    %1057 = vmatpush1.msra.mxu0 %v941
    %1058 = vmatprep.subr.mxu0 0.0
    %1059 = vmatpush1.msra.mxu0 %v942
    %1060 = vmatprep.subr.mxu0 0.0
    %1061 = vmatpush1.msra.mxu0 %v943
    %1062 = vmatprep.subr.mxu0 0.0
    %1063 = vmatpush1.msra.mxu0 %v944
    %1064 = vmatprep.subr.mxu0 0.0
    %1065 = vmatpush1.msra.mxu0 0.0
    %1066 = vmatprep.subr.mxu0 0.0
    %1067 = vmatpush1.msra.mxu0 0.0
    %1068 = vmatprep.subr.mxu0 0.0
    %1069 = vmatpush1.msra.mxu0 0.0
    %1070 = vmatprep.subr.mxu0 0.0
    %1071 = vmatpush1.msra.mxu0 0.0
    %1072 = vmatprep.subr.mxu0 0.0
    %1073 = vmatpush1.msra.mxu0 0.0
    %1074 = vmatprep.subr.mxu0 0.0
    %1075 = vmatpush1.msra.mxu0 0.0
    %1076 = vmatprep.subr.mxu0 0.0
    %1077 = vmatpush1.msra.mxu0 0.0
    %1078 = vmatprep.subr.mxu0 0.0
    %1079 = vmatpush1.msra.mxu0 0.0
    %1080 = vmatprep.subr.mxu0 0.0
    %1081 = vmatpush1.msra.mxu0 0.0
    %1082 = vmatprep.subr.mxu0 0.0
    %1083 = vmatpush1.msra.mxu0 0.0
    %1084 = vmatprep.subr.mxu0 0.0
    %1085 = vmatpush1.msra.mxu0 0.0
    %1086 = vmatprep.subr.mxu0 0.0
    %1087 = vmatpush1.msra.mxu0 0.0
    %1088 = vmatprep.subr.mxu0 0.0
    %1089 = vmatpush1.msra.mxu0 0.0
    %1090 = vmatprep.subr.mxu0 0.0
    %1091 = vmatpush1.msra.mxu0 0.0
    %1092 = vmatprep.subr.mxu0 0.0
    %1093 = vmatpush1.msra.mxu0 0.0
    %1094 = vmatprep.subr.mxu0 0.0
    %1095 = vmatpush1.msra.mxu0 0.0
    %1096 = vmatprep.mubr.f32.mxu0 0.0
    %1097 = vmatmul.mubr.f32.gmra.mrb[0].mxu0 %v926
    %v1098 = vpop.f32.mrb[0].mxu0
    %v1099 = vadd.f32 %v1029, %v1098
    %v1100 = vpop.f32.mrb[0].mxu0
    %1101 = vdwg.mxu0
    %v1102 = vld [vmem:[%s7] sm:$0x1]
    %v1104 = vlaneseq
    %v1105 = vshrl.u32 %v1104, 7
    %v1106 = vsub.s32 0, %v1105
    %v1107 = vrot.slane %v1102, %v1106
    %v1109 = vadd.f32 %v1099, %v1107
    %1110 = vst [vmem:[#allocation10] sm:$0x3] %v1109
    // Predicated region
    $region50: #{tpu_custom_call.1} parent=1 // pred_check
      _
    $region51: #{tpu_custom_call.1} parent=1 // pred_check_branch
      %1112 = sbr.rel (0) target = $region53
    $region52: #{tpu_custom_call.1} parent=1 // pred_region
      %s1114 = ssub.s32 32, 32
      %1115 = vsyncadd [#allocation4], %s1114
      %s1117 = sshll.u32 [#allocation10], 4
      %s1118 = int_to_ptr.vmem [resolvable:$true] %s1117
      %1120 = dma.vmem_to_hbm [thread:$0]  %s1118, 32, %s8, [#allocation4]
    $region53: #{tpu_custom_call.1} parent=1 // pred_fallthru
      _
    // Predicated region
    $region54: #{tpu_custom_call.1} parent=1 // pred_check
      _
    $region55: #{tpu_custom_call.1} parent=1 // pred_check_branch
      %1122 = sbr.rel (0) target = $region57
    $region56: #{tpu_custom_call.1} parent=1 // pred_region
      %1123 = dma.done [#allocation4], 32
    $region57: #{tpu_custom_call.1} parent=1 // pred_fallthru
      _
    %1124 = vsyncpa [#allocation3], 1
    %1125 = vsyncpa [#allocation6], 1
    %1126 = vsyncpa [#allocation9], 1
    %1127 = vsyncpa [#allocation4], 1

</llo_original>
